<compile_context>
chip_gen: v5e
topology: v5e:2x2
jax: 0.10.0
libtpu: 0.0.40
codegen_flags: <defaults>
</compile_context>

<pallas_src>
import math
from typing import NamedTuple, Optional

import jax
import jax.numpy as jnp
from jax.experimental import pallas as pl
from jax.experimental.pallas import tpu as pltpu


_LANE = 128


def _round_up(x: int, n: int) -> int:
    return ((x + n - 1) // n) * n


class TransitionParams(NamedTuple):
    w1t: jax.Array   # [c_pad, c_pad]  W1^T (optionally bf16), lane-padded
    w2t: jax.Array
    w3t: jax.Array
    b1: jax.Array    # [1, c_pad] f32, lane-padded
    b2: jax.Array
    b3: jax.Array
    c: int           # un-padded feature width


def prepare_transition_params(w1, b1, w2, b2, w3, b3, *, mxu_dtype=None) -> TransitionParams:
    """One-time parameter preparation (hoisted out of the per-call path).

    * transposes the three PyTorch-convention (out, in) weights so the kernel
      does `row_tile @ W^T` directly on the MXU,
    * optionally casts them to `mxu_dtype` (e.g. jnp.bfloat16) for the
      bf16-native MXU path (accumulation stays f32 inside the kernel),
    * casts biases to f32 rows (added onto the f32 accumulator),
    * zero-pads the feature dim up to a multiple of 128 lanes so stores are
      unmasked / lane-dense even when c < 128.
    Call once at parameter-init time; reuse the result on every forward.
    """
    c = w1.shape[0]
    for w in (w1, w2, w3):
        assert w.shape == (c, c)
    for b in (b1, b2, b3):
        assert b.shape == (c,)

    c_pad = max(_LANE, _round_up(c, _LANE))
    pad = c_pad - c

    def prep_w(w):
        wt = w.T
        if mxu_dtype is not None:
            wt = wt.astype(mxu_dtype)
        if pad:
            wt = jnp.pad(wt, ((0, pad), (0, pad)))
        return wt

    def prep_b(b):
        br = b.reshape(1, c).astype(jnp.float32)
        if pad:
            br = jnp.pad(br, ((0, 0), (0, pad)))
        return br

    return TransitionParams(prep_w(w1), prep_w(w2), prep_w(w3),
                            prep_b(b1), prep_b(b2), prep_b(b3), c)


def _transition_kernel(s_ref, w1_ref, w2_ref, w3_ref,
                       b1_ref, b2_ref, b3_ref, out_ref):
    # s_ref:        [tm, c_pad] row tile of the flattened single representation
    # w{1,2,3}_ref: [c_pad, c_pad] transposed (optionally bf16) weights, resident
    # b{1,2,3}_ref: [1, c_pad] f32 biases, resident
    # out_ref:      [tm, c_pad]
    s0 = s_ref[...]
    w_dtype = w1_ref.dtype  # MXU compute dtype (bf16 when prepared with mxu_dtype=bf16)

    x = jnp.dot(s0.astype(w_dtype), w1_ref[...], preferred_element_type=jnp.float32)
    x = jnp.maximum(x + b1_ref[...], 0.0)

    x = jnp.dot(x.astype(w_dtype), w2_ref[...], preferred_element_type=jnp.float32)
    x = jnp.maximum(x + b2_ref[...], 0.0)

    x = jnp.dot(x.astype(w_dtype), w3_ref[...], preferred_element_type=jnp.float32)
    x = x + b3_ref[...] + s0.astype(jnp.float32)          # residual

    out_ref[...] = x.astype(out_ref.dtype)


def _pick_tm(m: int, itemsize: int) -> int:
    align = max(8, 32 // itemsize)            # sublane alignment for the dtype
    target = 2048 if itemsize <= 2 else 1024  # bf16 rides the v6e roofline ridge
    if m >= 2 * target:
        return target
    if m > 2 * align:
        # Split into (at least) two balanced "parallel" blocks so both of
        # v7x's TensorCores get work for medium M (avoids a 1-block grid).
        return _round_up(-(-m // 2), align)
    return max(align, _round_up(m, align))    # tiny input: single block


def apply_structure_module_transition_layer(s, params: TransitionParams, *,
                                             tm: Optional[int] = None,
                                             donate_s: bool = False):
    """Fused forward: linear_3(relu(linear_2(relu(linear_1(s))))) + s."""
    c = params.c
    assert s.shape[-1] == c, (s.shape, c)
    *lead, _ = s.shape
    m = math.prod(lead) if lead else 1
    if m == 0:
        return s                               # empty batch: nothing to do

    c_pad = params.w1t.shape[0]
    itemsize = jnp.dtype(s.dtype).itemsize
    if tm is None:
        tm = _pick_tm(m, itemsize)
    grid = (pl.cdiv(m, tm),)

    s2d = s.reshape(m, c)
    if c_pad != c:
        s2d = jnp.pad(s2d, ((0, 0), (0, c_pad - c)))  # lane-dense feature dim

    w_itemsize = jnp.dtype(params.w1t.dtype).itemsize
    cost = pl.CostEstimate(
        flops=2 * m * c_pad * c_pad * 3,
        transcendentals=0,
        bytes_accessed=(2 * m * c_pad * itemsize
                        + 3 * c_pad * c_pad * w_itemsize
                        + 3 * c_pad * 4),
    )

    def run(single_buffer_const: bool):
        const_kwargs = {}
        if single_buffer_const:
            # Constant index_map -> second pipeline buffer is pure VMEM waste.
            const_kwargs = dict(pipeline_mode=pl.Buffered(1))
        in_specs = [
            pl.BlockSpec((tm, c_pad), lambda i: (i, 0)),                      # s tile
            pl.BlockSpec((c_pad, c_pad), lambda i: (0, 0), **const_kwargs),   # W1^T
            pl.BlockSpec((c_pad, c_pad), lambda i: (0, 0), **const_kwargs),   # W2^T
            pl.BlockSpec((c_pad, c_pad), lambda i: (0, 0), **const_kwargs),   # W3^T
            pl.BlockSpec((1, c_pad), lambda i: (0, 0), **const_kwargs),       # b1
            pl.BlockSpec((1, c_pad), lambda i: (0, 0), **const_kwargs),       # b2
            pl.BlockSpec((1, c_pad), lambda i: (0, 0), **const_kwargs),       # b3
        ]
        call_kwargs = {}
        if donate_s:
            call_kwargs["input_output_aliases"] = {0: 0}
        return pl.pallas_call(
            _transition_kernel,
            out_shape=jax.ShapeDtypeStruct((m, c_pad), s.dtype),
            grid_spec=pltpu.PrefetchScalarGridSpec(
                num_scalar_prefetch=0,
                grid=grid,
                in_specs=in_specs,
                out_specs=pl.BlockSpec((tm, c_pad), lambda i: (i, 0)),
            ),
            compiler_params=pltpu.CompilerParams(
                dimension_semantics=("parallel",),
            ),
            cost_estimate=cost,
            **call_kwargs,
        )(s2d, params.w1t, params.w2t, params.w3t, params.b1, params.b2, params.b3)

    try:
        out = run(single_buffer_const=True)
    except Exception:
        # Fallback for jax builds that reject Buffered(1) on constant blocks.
        out = run(single_buffer_const=False)

    if c_pad != c:
        out = out[:, :c]
    return out.reshape(*lead, c)


def structure_module_transition_layer(s, w1, b1, w2, b2, w3, b3, *,
                                      tm=None, mxu_dtype=None):
    """Convenience one-shot API (prepares params then applies). Prefer
    prepare_transition_params() + apply_structure_module_transition_layer()
    when calling repeatedly with the same parameters."""
    params = prepare_transition_params(w1, b1, w2, b2, w3, b3, mxu_dtype=mxu_dtype)
    return apply_structure_module_transition_layer(s, params, tm=tm)


def _reference(s, w1, b1, w2, b2, w3, b3):
    x = jnp.maximum(jnp.einsum("...i,oi->...o", s, w1) + b1, 0.0)
    x = jnp.maximum(jnp.einsum("...i,oi->...o", x, w2) + b2, 0.0)
    x = jnp.einsum("...i,oi->...o", x, w3) + b3
    return x + s


if __name__ == "__main__":
    # Small shapes consistent with the module: batch=2, N_res=8, c=32.
    batch, n_res, c = 2, 8, 32

    key = jax.random.PRNGKey(0)
    k_s, k1, k2, k3, kb1, kb2, kb3 = jax.random.split(key, 7)

    s = jax.random.normal(k_s, (batch, n_res, c), dtype=jnp.float32)
    # Deterministic synthetic parameters (no checkpoint load).
    w1 = jax.random.normal(k1, (c, c), dtype=jnp.float32) * 0.05
    w2 = jax.random.normal(k2, (c, c), dtype=jnp.float32) * 0.05
    w3 = jax.random.normal(k3, (c, c), dtype=jnp.float32) * 0.05
    b1 = jax.random.normal(kb1, (c,), dtype=jnp.float32) * 0.02
    b2 = jax.random.normal(kb2, (c,), dtype=jnp.float32) * 0.02
    b3 = jax.random.normal(kb3, (c,), dtype=jnp.float32) * 0.02

    # Prepare parameters ONCE (transpose + bias cast + lane padding hoisted
    # out of the per-call path) and reuse across calls.
    params = prepare_transition_params(w1, b1, w2, b2, w3, b3)

    out = jax.block_until_ready(apply_structure_module_transition_layer(s, params))
    ref = _reference(s, w1, b1, w2, b2, w3, b3)
    assert out.shape == (batch, n_res, c)
    assert out.dtype == s.dtype
    assert jnp.allclose(out, ref, atol=1e-5, rtol=1e-5)

    # Ragged boundary + multi-block grid (m = 26 -> two blocks, last masked).
    s_odd = jax.random.normal(k_s, (2, 13, c), dtype=jnp.float32)
    out_odd = jax.block_until_ready(
        apply_structure_module_transition_layer(s_odd, params))
    ref_odd = _reference(s_odd, w1, b1, w2, b2, w3, b3)
    assert jnp.allclose(out_odd, ref_odd, atol=1e-5, rtol=1e-5)

    # Opt-in bf16 MXU path: bf16 activations + bf16-prepared weights,
    # f32 accumulation / bias / ReLU / residual inside the kernel.
    params_bf16 = prepare_transition_params(w1, b1, w2, b2, w3, b3,
                                            mxu_dtype=jnp.bfloat16)
    s_bf16 = s.astype(jnp.bfloat16)
    out_bf16 = jax.block_until_ready(
        apply_structure_module_transition_layer(s_bf16, params_bf16))
    assert out_bf16.dtype == jnp.bfloat16
    assert jnp.allclose(out_bf16.astype(jnp.float32), ref, atol=5e-2, rtol=5e-2)

    print("KERNEL_OK")
</pallas_src>

<mosaic_0001>
module attributes {stable_mosaic.version = 11 : i64} {
  func.func @_transition_kernel(%arg0: i32, %arg1: memref<16x128xf32, #tpu.memory_space<vmem>>, %arg2: memref<128x128xf32, #tpu.memory_space<vmem>>, %arg3: memref<128x128xf32, #tpu.memory_space<vmem>>, %arg4: memref<128x128xf32, #tpu.memory_space<vmem>>, %arg5: memref<1x128xf32, #tpu.memory_space<vmem>>, %arg6: memref<1x128xf32, #tpu.memory_space<vmem>>, %arg7: memref<1x128xf32, #tpu.memory_space<vmem>>, %arg8: memref<16x128xf32, #tpu.memory_space<vmem>>) attributes {dimension_semantics = [#tpu.dimension_semantics<parallel>], iteration_bounds = array<i64: 1>, scalar_prefetch = 0 : i64, scratch_operands = 0 : i64, tpu.core_type = #tpu.core_type<tc>, window_params = [{transform_indices = @transform_0, window_bounds = array<i64: 16, 128>}, {pipeline_mode = #tpu.pipeline_mode<synchronous>, transform_indices = @transform_1, window_bounds = array<i64: 128, 128>}, {pipeline_mode = #tpu.pipeline_mode<synchronous>, transform_indices = @transform_2, window_bounds = array<i64: 128, 128>}, {pipeline_mode = #tpu.pipeline_mode<synchronous>, transform_indices = @transform_3, window_bounds = array<i64: 128, 128>}, {pipeline_mode = #tpu.pipeline_mode<synchronous>, transform_indices = @transform_4, window_bounds = array<i64: 1, 128>}, {pipeline_mode = #tpu.pipeline_mode<synchronous>, transform_indices = @transform_5, window_bounds = array<i64: 1, 128>}, {pipeline_mode = #tpu.pipeline_mode<synchronous>, transform_indices = @transform_6, window_bounds = array<i64: 1, 128>}, {transform_indices = @transform_7, window_bounds = array<i64: 16, 128>}]} {
    %c0 = arith.constant 0 : index
    %c0_0 = arith.constant 0 : index
    %0 = vector.load %arg1[%c0, %c0_0] : memref<16x128xf32, #tpu.memory_space<vmem>>, vector<16x128xf32>
    %c0_1 = arith.constant 0 : index
    %c0_2 = arith.constant 0 : index
    %1 = vector.load %arg2[%c0_1, %c0_2] : memref<128x128xf32, #tpu.memory_space<vmem>>, vector<128x128xf32>
    %cst = arith.constant dense<0.000000e+00> : vector<16x128xf32>
    %2 = tpu.matmul %0, %1, %cst {dimension_numbers = #tpu.dot_dimension_numbers<[1], [0], [0], [1], [0, 0, 1, 1], [], []>} : vector<16x128xf32>, vector<128x128xf32>, vector<16x128xf32> -> vector<16x128xf32>
    %c0_3 = arith.constant 0 : index
    %c0_4 = arith.constant 0 : index
    %3 = vector.load %arg5[%c0_3, %c0_4] : memref<1x128xf32, #tpu.memory_space<vmem>>, vector<1x128xf32>
    %4 = vector.broadcast %3 : vector<1x128xf32> to vector<16x128xf32>
    %5 = arith.addf %2, %4 : vector<16x128xf32>
    %cst_5 = arith.constant 0.000000e+00 : f32
    %6 = vector.broadcast %cst_5 : f32 to vector<16x128xf32>
    %7 = arith.maximumf %5, %6 : vector<16x128xf32>
    %c0_6 = arith.constant 0 : index
    %c0_7 = arith.constant 0 : index
    %8 = vector.load %arg3[%c0_6, %c0_7] : memref<128x128xf32, #tpu.memory_space<vmem>>, vector<128x128xf32>
    %cst_8 = arith.constant dense<0.000000e+00> : vector<16x128xf32>
    %9 = tpu.matmul %7, %8, %cst_8 {dimension_numbers = #tpu.dot_dimension_numbers<[1], [0], [0], [1], [0, 0, 1, 1], [], []>} : vector<16x128xf32>, vector<128x128xf32>, vector<16x128xf32> -> vector<16x128xf32>
    %c0_9 = arith.constant 0 : index
    %c0_10 = arith.constant 0 : index
    %10 = vector.load %arg6[%c0_9, %c0_10] : memref<1x128xf32, #tpu.memory_space<vmem>>, vector<1x128xf32>
    %11 = vector.broadcast %10 : vector<1x128xf32> to vector<16x128xf32>
    %12 = arith.addf %9, %11 : vector<16x128xf32>
    %cst_11 = arith.constant 0.000000e+00 : f32
    %13 = vector.broadcast %cst_11 : f32 to vector<16x128xf32>
    %14 = arith.maximumf %12, %13 : vector<16x128xf32>
    %c0_12 = arith.constant 0 : index
    %c0_13 = arith.constant 0 : index
    %15 = vector.load %arg4[%c0_12, %c0_13] : memref<128x128xf32, #tpu.memory_space<vmem>>, vector<128x128xf32>
    %cst_14 = arith.constant dense<0.000000e+00> : vector<16x128xf32>
    %16 = tpu.matmul %14, %15, %cst_14 {dimension_numbers = #tpu.dot_dimension_numbers<[1], [0], [0], [1], [0, 0, 1, 1], [], []>} : vector<16x128xf32>, vector<128x128xf32>, vector<16x128xf32> -> vector<16x128xf32>
    %c0_15 = arith.constant 0 : index
    %c0_16 = arith.constant 0 : index
    %17 = vector.load %arg7[%c0_15, %c0_16] : memref<1x128xf32, #tpu.memory_space<vmem>>, vector<1x128xf32>
    %18 = vector.broadcast %17 : vector<1x128xf32> to vector<16x128xf32>
    %19 = arith.addf %16, %18 : vector<16x128xf32>
    %20 = arith.addf %19, %0 : vector<16x128xf32>
    %c0_17 = arith.constant 0 : index
    %c0_18 = arith.constant 0 : index
    %21 = vector.load %arg8[%c0_17, %c0_18] : memref<16x128xf32, #tpu.memory_space<vmem>>, vector<16x128xf32>
    tpu.vector_store %arg8[%c0_17, %c0_18], %20 {strides = array<i32>} : memref<16x128xf32, #tpu.memory_space<vmem>>, vector<16x128xf32>,
    return
  }
  func.func @transform_0(%arg0: i32) -> (i32, i32) {
    %c0_i32 = arith.constant 0 : i32
    %c0_i32_0 = arith.constant 0 : i32
    return %arg0, %c0_i32 : i32, i32
  }
  func.func @transform_1(%arg0: i32) -> (i32, i32) {
    %c0_i32 = arith.constant 0 : i32
    %c0_i32_0 = arith.constant 0 : i32
    %c0_i32_1 = arith.constant 0 : i32
    return %c0_i32, %c0_i32_0 : i32, i32
  }
  func.func @transform_2(%arg0: i32) -> (i32, i32) {
    %c0_i32 = arith.constant 0 : i32
    %c0_i32_0 = arith.constant 0 : i32
    %c0_i32_1 = arith.constant 0 : i32
    return %c0_i32, %c0_i32_0 : i32, i32
  }
  func.func @transform_3(%arg0: i32) -> (i32, i32) {
    %c0_i32 = arith.constant 0 : i32
    %c0_i32_0 = arith.constant 0 : i32
    %c0_i32_1 = arith.constant 0 : i32
    return %c0_i32, %c0_i32_0 : i32, i32
  }
  func.func @transform_4(%arg0: i32) -> (i32, i32) {
    %c0_i32 = arith.constant 0 : i32
    %c0_i32_0 = arith.constant 0 : i32
    %c0_i32_1 = arith.constant 0 : i32
    return %c0_i32, %c0_i32_0 : i32, i32
  }
  func.func @transform_5(%arg0: i32) -> (i32, i32) {
    %c0_i32 = arith.constant 0 : i32
    %c0_i32_0 = arith.constant 0 : i32
    %c0_i32_1 = arith.constant 0 : i32
    return %c0_i32, %c0_i32_0 : i32, i32
  }
  func.func @transform_6(%arg0: i32) -> (i32, i32) {
    %c0_i32 = arith.constant 0 : i32
    %c0_i32_0 = arith.constant 0 : i32
    %c0_i32_1 = arith.constant 0 : i32
    return %c0_i32, %c0_i32_0 : i32, i32
  }
  func.func @transform_7(%arg0: i32) -> (i32, i32) {
    %c0_i32 = arith.constant 0 : i32
    %c0_i32_0 = arith.constant 0 : i32
    return %arg0, %c0_i32 : i32, i32
  }
}

module attributes {stable_mosaic.version = 11 : i64} {
  func.func @_transition_kernel(%arg0: i32, %arg1: memref<16x128xf32, #tpu.memory_space<vmem>>, %arg2: memref<128x128xf32, #tpu.memory_space<vmem>>, %arg3: memref<128x128xf32, #tpu.memory_space<vmem>>, %arg4: memref<128x128xf32, #tpu.memory_space<vmem>>, %arg5: memref<1x128xf32, #tpu.memory_space<vmem>>, %arg6: memref<1x128xf32, #tpu.memory_space<vmem>>, %arg7: memref<1x128xf32, #tpu.memory_space<vmem>>, %arg8: memref<16x128xf32, #tpu.memory_space<vmem>>) attributes {dimension_semantics = [#tpu.dimension_semantics<parallel>], iteration_bounds = array<i64: 1>, scalar_prefetch = 0 : i64, scratch_operands = 0 : i64, tpu.core_type = #tpu.core_type<tc>, window_params = [{transform_indices = @transform_0, window_bounds = array<i64: 16, 128>}, {pipeline_mode = #tpu.pipeline_mode<synchronous>, transform_indices = @transform_1, window_bounds = array<i64: 128, 128>}, {pipeline_mode = #tpu.pipeline_mode<synchronous>, transform_indices = @transform_2, window_bounds = array<i64: 128, 128>}, {pipeline_mode = #tpu.pipeline_mode<synchronous>, transform_indices = @transform_3, window_bounds = array<i64: 128, 128>}, {pipeline_mode = #tpu.pipeline_mode<synchronous>, transform_indices = @transform_4, window_bounds = array<i64: 1, 128>}, {pipeline_mode = #tpu.pipeline_mode<synchronous>, transform_indices = @transform_5, window_bounds = array<i64: 1, 128>}, {pipeline_mode = #tpu.pipeline_mode<synchronous>, transform_indices = @transform_6, window_bounds = array<i64: 1, 128>}, {transform_indices = @transform_7, window_bounds = array<i64: 16, 128>}]} {
    %c0 = arith.constant 0 : index
    %c0_0 = arith.constant 0 : index
    %0 = vector.load %arg1[%c0, %c0_0] : memref<16x128xf32, #tpu.memory_space<vmem>>, vector<16x128xf32>
    %c0_1 = arith.constant 0 : index
    %c0_2 = arith.constant 0 : index
    %1 = vector.load %arg2[%c0_1, %c0_2] : memref<128x128xf32, #tpu.memory_space<vmem>>, vector<128x128xf32>
    %cst = arith.constant dense<0.000000e+00> : vector<16x128xf32>
    %2 = tpu.matmul %0, %1, %cst {dimension_numbers = #tpu.dot_dimension_numbers<[1], [0], [0], [1], [0, 0, 1, 1], [], []>} : vector<16x128xf32>, vector<128x128xf32>, vector<16x128xf32> -> vector<16x128xf32>
    %c0_3 = arith.constant 0 : index
    %c0_4 = arith.constant 0 : index
    %3 = vector.load %arg5[%c0_3, %c0_4] : memref<1x128xf32, #tpu.memory_space<vmem>>, vector<1x128xf32>
    %4 = vector.broadcast %3 : vector<1x128xf32> to vector<16x128xf32>
    %5 = arith.addf %2, %4 : vector<16x128xf32>
    %cst_5 = arith.constant 0.000000e+00 : f32
    %6 = vector.broadcast %cst_5 : f32 to vector<16x128xf32>
    %7 = arith.maximumf %5, %6 : vector<16x128xf32>
    %c0_6 = arith.constant 0 : index
    %c0_7 = arith.constant 0 : index
    %8 = vector.load %arg3[%c0_6, %c0_7] : memref<128x128xf32, #tpu.memory_space<vmem>>, vector<128x128xf32>
    %cst_8 = arith.constant dense<0.000000e+00> : vector<16x128xf32>
    %9 = tpu.matmul %7, %8, %cst_8 {dimension_numbers = #tpu.dot_dimension_numbers<[1], [0], [0], [1], [0, 0, 1, 1], [], []>} : vector<16x128xf32>, vector<128x128xf32>, vector<16x128xf32> -> vector<16x128xf32>
    %c0_9 = arith.constant 0 : index
    %c0_10 = arith.constant 0 : index
    %10 = vector.load %arg6[%c0_9, %c0_10] : memref<1x128xf32, #tpu.memory_space<vmem>>, vector<1x128xf32>
    %11 = vector.broadcast %10 : vector<1x128xf32> to vector<16x128xf32>
    %12 = arith.addf %9, %11 : vector<16x128xf32>
    %cst_11 = arith.constant 0.000000e+00 : f32
    %13 = vector.broadcast %cst_11 : f32 to vector<16x128xf32>
    %14 = arith.maximumf %12, %13 : vector<16x128xf32>
    %c0_12 = arith.constant 0 : index
    %c0_13 = arith.constant 0 : index
    %15 = vector.load %arg4[%c0_12, %c0_13] : memref<128x128xf32, #tpu.memory_space<vmem>>, vector<128x128xf32>
    %cst_14 = arith.constant dense<0.000000e+00> : vector<16x128xf32>
    %16 = tpu.matmul %14, %15, %cst_14 {dimension_numbers = #tpu.dot_dimension_numbers<[1], [0], [0], [1], [0, 0, 1, 1], [], []>} : vector<16x128xf32>, vector<128x128xf32>, vector<16x128xf32> -> vector<16x128xf32>
    %c0_15 = arith.constant 0 : index
    %c0_16 = arith.constant 0 : index
    %17 = vector.load %arg7[%c0_15, %c0_16] : memref<1x128xf32, #tpu.memory_space<vmem>>, vector<1x128xf32>
    %18 = vector.broadcast %17 : vector<1x128xf32> to vector<16x128xf32>
    %19 = arith.addf %16, %18 : vector<16x128xf32>
    %20 = arith.addf %19, %0 : vector<16x128xf32>
    %c0_17 = arith.constant 0 : index
    %c0_18 = arith.constant 0 : index
    %21 = vector.load %arg8[%c0_17, %c0_18] : memref<16x128xf32, #tpu.memory_space<vmem>>, vector<16x128xf32>
    tpu.vector_store %arg8[%c0_17, %c0_18], %20 {strides = array<i32>} : memref<16x128xf32, #tpu.memory_space<vmem>>, vector<16x128xf32>,
    return
  }
  func.func @transform_0(%arg0: i32) -> (i32, i32) {
    %c0_i32 = arith.constant 0 : i32
    %c0_i32_0 = arith.constant 0 : i32
    return %arg0, %c0_i32 : i32, i32
  }
  func.func @transform_1(%arg0: i32) -> (i32, i32) {
    %c0_i32 = arith.constant 0 : i32
    %c0_i32_0 = arith.constant 0 : i32
    %c0_i32_1 = arith.constant 0 : i32
    return %c0_i32, %c0_i32_0 : i32, i32
  }
  func.func @transform_2(%arg0: i32) -> (i32, i32) {
    %c0_i32 = arith.constant 0 : i32
    %c0_i32_0 = arith.constant 0 : i32
    %c0_i32_1 = arith.constant 0 : i32
    return %c0_i32, %c0_i32_0 : i32, i32
  }
  func.func @transform_3(%arg0: i32) -> (i32, i32) {
    %c0_i32 = arith.constant 0 : i32
    %c0_i32_0 = arith.constant 0 : i32
    %c0_i32_1 = arith.constant 0 : i32
    return %c0_i32, %c0_i32_0 : i32, i32
  }
  func.func @transform_4(%arg0: i32) -> (i32, i32) {
    %c0_i32 = arith.constant 0 : i32
    %c0_i32_0 = arith.constant 0 : i32
    %c0_i32_1 = arith.constant 0 : i32
    return %c0_i32, %c0_i32_0 : i32, i32
  }
  func.func @transform_5(%arg0: i32) -> (i32, i32) {
    %c0_i32 = arith.constant 0 : i32
    %c0_i32_0 = arith.constant 0 : i32
    %c0_i32_1 = arith.constant 0 : i32
    return %c0_i32, %c0_i32_0 : i32, i32
  }
  func.func @transform_6(%arg0: i32) -> (i32, i32) {
    %c0_i32 = arith.constant 0 : i32
    %c0_i32_0 = arith.constant 0 : i32
    %c0_i32_1 = arith.constant 0 : i32
    return %c0_i32, %c0_i32_0 : i32, i32
  }
  func.func @transform_7(%arg0: i32) -> (i32, i32) {
    %c0_i32 = arith.constant 0 : i32
    %c0_i32_0 = arith.constant 0 : i32
    return %arg0, %c0_i32 : i32, i32
  }
}

</mosaic_0001>

<llo_original>
// kernel: tpu_custom_call.1
$region0: #{tpu_custom_call.1}
  #allocation0 [shape = 'u32[]', space=smem, size = 0x4, offset = 0x4, fixed_abs, tag = 'smem constant byte address 0x4 - core index']
  #allocation1 [shape = 'u32[72,128]{1,0:T(1,128)}', space=vmem, size = 0x9000, scoped, tag = 'internal scratch']
  %s0 = inlined_call_operand.hbm [shape: f32[16,128], index: 0, kind: input, shape index: {}]
  %s1 = inlined_call_operand.hbm [shape: f32[128,128], index: 1, kind: input, shape index: {}]
  %s2 = inlined_call_operand.hbm [shape: f32[128,128], index: 2, kind: input, shape index: {}]
  %s3 = inlined_call_operand.hbm [shape: f32[128,128], index: 3, kind: input, shape index: {}]
  %s4 = inlined_call_operand.vmem [shape: f32[1,128], index: 4, kind: input, shape index: {}]
  %s5 = inlined_call_operand.vmem [shape: f32[1,128], index: 5, kind: input, shape index: {}]
  %s6 = inlined_call_operand.vmem [shape: f32[1,128], index: 6, kind: input, shape index: {}]
  %s7 = inlined_call_operand.hbm [shape: f32[16,128], index: 7, kind: output, shape index: {}]
  %s8 = sld [smem:[#allocation0]]
  $region54: #{tpu_custom_call.1} parent=0
    _
  %s10 = ssub.s32 1, %s8
  %s11 = scalar_select 0, %s10, %s8
  $region1: #{tpu_custom_call.1} parent=0
    #allocation2 [shape = 'u8[8192]{0}', space=vmem, size = 0x2000, scoped, tag = 'input window, operand 0, single buffered']
    #allocation3 [shape = 's32[1]{0}', space=sflag, size = 0x4, scoped, tag = 'scoped memory for tpu_custom_call.1']
    #allocation4 [shape = 's32[1]{0}', space=sflag, size = 0x4, scoped, tag = 'scoped memory for tpu_custom_call.1']
    #allocation5 [shape = 'u8[65536]{0}', space=vmem, size = 0x10000, scoped, tag = 'input window, operand 1, single buffered']
    #allocation6 [shape = 's32[1]{0}', space=sflag, size = 0x4, scoped, tag = 'scoped memory for tpu_custom_call.1']
    #allocation7 [shape = 'u8[65536]{0}', space=vmem, size = 0x10000, scoped, tag = 'input window, operand 2, single buffered']
    #allocation8 [shape = 'u8[65536]{0}', space=vmem, size = 0x10000, scoped, tag = 'input window, operand 3, single buffered']
    #allocation9 [shape = 's32[1]{0}', space=sflag, size = 0x4, scoped, tag = 'scoped memory for tpu_custom_call.1']
    #allocation10 [shape = 'u8[8192]{0}', space=vmem, size = 0x2000, scoped, tag = 'output window, operand 0, single buffered']
    %12 = vsyncpa [#allocation3], 0
    %13 = vsyncpa [#allocation6], 0
    %14 = vsyncpa [#allocation9], 0
    %15 = vsyncpa [#allocation4], 0
    // Predicated region
    $region2: #{tpu_custom_call.1} parent=1 // pred_check
      _
    $region3: #{tpu_custom_call.1} parent=1 // pred_check_branch
      %17 = sbr.rel (0) target = $region5
    $region4: #{tpu_custom_call.1} parent=1 // pred_region
      %19 = vsyncadd [#allocation3], 0
      %s20 = sshll.u32 %s0, 4
      %s21 = int_to_ptr.hbm [resolvable:$true] %s20
      %s22 = sshll.u32 [#allocation2], 4
      %s23 = int_to_ptr.vmem [resolvable:$true] %s22
      %28 = dma.hbm_to_vmem [thread:$0]  %s21, 256, %s23, [#allocation3], 128, 128, 8
    $region5: #{tpu_custom_call.1} parent=1 // pred_fallthru
      _
    // Predicated region
    $region6: #{tpu_custom_call.1} parent=1 // pred_check
      _
    $region7: #{tpu_custom_call.1} parent=1 // pred_check_branch
      %30 = sbr.rel (0) target = $region9
    $region8: #{tpu_custom_call.1} parent=1 // pred_region
      %32 = vsyncadd [#allocation6], 0
      %s33 = sshll.u32 %s1, 4
      %s34 = int_to_ptr.hbm [resolvable:$true] %s33
      %s35 = sshll.u32 [#allocation5], 4
      %s36 = int_to_ptr.vmem [resolvable:$true] %s35
      %41 = dma.hbm_to_vmem [thread:$0]  %s34, 2048, %s36, [#allocation6], 128, 128, 8
    $region9: #{tpu_custom_call.1} parent=1 // pred_fallthru
      _
    // Predicated region
    $region10: #{tpu_custom_call.1} parent=1 // pred_check
      _
    $region11: #{tpu_custom_call.1} parent=1 // pred_check_branch
      %43 = sbr.rel (0) target = $region13
    $region12: #{tpu_custom_call.1} parent=1 // pred_region
      %45 = vsyncadd [#allocation6], 0
      %s46 = sshll.u32 %s2, 4
      %s47 = int_to_ptr.hbm [resolvable:$true] %s46
      %s48 = sshll.u32 [#allocation7], 4
      %s49 = int_to_ptr.vmem [resolvable:$true] %s48
      %54 = dma.hbm_to_vmem [thread:$0]  %s47, 2048, %s49, [#allocation6], 128, 128, 8
    $region13: #{tpu_custom_call.1} parent=1 // pred_fallthru
      _
    // Predicated region
    $region14: #{tpu_custom_call.1} parent=1 // pred_check
      _
    $region15: #{tpu_custom_call.1} parent=1 // pred_check_branch
      %56 = sbr.rel (0) target = $region17
    $region16: #{tpu_custom_call.1} parent=1 // pred_region
      %58 = vsyncadd [#allocation9], 0
      %s59 = sshll.u32 %s3, 4
      %s60 = int_to_ptr.hbm [resolvable:$true] %s59
      %s61 = sshll.u32 [#allocation8], 4
      %s62 = int_to_ptr.vmem [resolvable:$true] %s61
      %67 = dma.hbm_to_vmem [thread:$0]  %s60, 2048, %s62, [#allocation9], 128, 128, 8
    $region17: #{tpu_custom_call.1} parent=1 // pred_fallthru
      _
    // Predicated region
    $region18: #{tpu_custom_call.1} parent=1 // pred_check
      _
    $region19: #{tpu_custom_call.1} parent=1 // pred_check_branch
      %69 = sbr.rel (0) target = $region21
    $region20: #{tpu_custom_call.1} parent=1 // pred_region
      _
    $region21: #{tpu_custom_call.1} parent=1 // pred_fallthru
      _
    // Predicated region
    $region22: #{tpu_custom_call.1} parent=1 // pred_check
      _
    $region23: #{tpu_custom_call.1} parent=1 // pred_check_branch
      %71 = sbr.rel (0) target = $region25
    $region24: #{tpu_custom_call.1} parent=1 // pred_region
      _
    $region25: #{tpu_custom_call.1} parent=1 // pred_fallthru
      _
    // Predicated region
    $region26: #{tpu_custom_call.1} parent=1 // pred_check
      _
    $region27: #{tpu_custom_call.1} parent=1 // pred_check_branch
      %73 = sbr.rel (0) target = $region29
    $region28: #{tpu_custom_call.1} parent=1 // pred_region
      _
    $region29: #{tpu_custom_call.1} parent=1 // pred_fallthru
      _
    // Predicated region
    $region30: #{tpu_custom_call.1} parent=1 // pred_check
      _
    $region31: #{tpu_custom_call.1} parent=1 // pred_check_branch
      %75 = sbr.rel (0) target = $region33
    $region32: #{tpu_custom_call.1} parent=1 // pred_region
      %77 = dma.done [#allocation3], 256
    $region33: #{tpu_custom_call.1} parent=1 // pred_fallthru
      _
    // Predicated region
    $region34: #{tpu_custom_call.1} parent=1 // pred_check
      _
    $region35: #{tpu_custom_call.1} parent=1 // pred_check_branch
      %79 = sbr.rel (0) target = $region37
    $region36: #{tpu_custom_call.1} parent=1 // pred_region
      %81 = dma.done [#allocation6], 2048
    $region37: #{tpu_custom_call.1} parent=1 // pred_fallthru
      _
    // Predicated region
    $region38: #{tpu_custom_call.1} parent=1 // pred_check
      _
    $region39: #{tpu_custom_call.1} parent=1 // pred_check_branch
      %83 = sbr.rel (0) target = $region41
    $region40: #{tpu_custom_call.1} parent=1 // pred_region
      %85 = dma.done [#allocation6], 2048
    $region41: #{tpu_custom_call.1} parent=1 // pred_fallthru
      _
    // Predicated region
    $region42: #{tpu_custom_call.1} parent=1 // pred_check
      _
    $region43: #{tpu_custom_call.1} parent=1 // pred_check_branch
      %87 = sbr.rel (0) target = $region45
    $region44: #{tpu_custom_call.1} parent=1 // pred_region
      %89 = dma.done [#allocation9], 2048
    $region45: #{tpu_custom_call.1} parent=1 // pred_fallthru
      _
    %v90 = vld [vmem:[#allocation2] sm:$0xff]
    %v91 = vld [vmem:[#allocation2 + $0x8] sm:$0xff]
    %v92 = vld [vmem:[#allocation5] sm:$0xff]
    %v93 = vld [vmem:[#allocation5 + $0x8] sm:$0xff]
    %v94 = vld [vmem:[#allocation5 + $0x10] sm:$0xff]
    %v95 = vld [vmem:[#allocation5 + $0x18] sm:$0xff]
    %v96 = vld [vmem:[#allocation5 + $0x20] sm:$0xff]
    %v97 = vld [vmem:[#allocation5 + $0x28] sm:$0xff]
    %v98 = vld [vmem:[#allocation5 + $0x30] sm:$0xff]
    %v99 = vld [vmem:[#allocation5 + $0x38] sm:$0xff]
    %v100 = vld [vmem:[#allocation5 + $0x40] sm:$0xff]
    %v101 = vld [vmem:[#allocation5 + $0x48] sm:$0xff]
    %v102 = vld [vmem:[#allocation5 + $0x50] sm:$0xff]
    %v103 = vld [vmem:[#allocation5 + $0x58] sm:$0xff]
    %v104 = vld [vmem:[#allocation5 + $0x60] sm:$0xff]
    %v105 = vld [vmem:[#allocation5 + $0x68] sm:$0xff]
    %v106 = vld [vmem:[#allocation5 + $0x70] sm:$0xff]
    %v107 = vld [vmem:[#allocation5 + $0x78] sm:$0xff]
    %v108 = vld [vmem:[%s4] sm:$0x1]
    %v110 = vperm.slane %v108, 0
    %112 = vmatpush.msra.mxu0 %v107
    %113 = vmatpush.msra.mxu0 %v106
    %114 = vmatpush.msra.mxu0 %v105
    %115 = vmatpush.msra.mxu0 %v104
    %116 = vmatpush.msra.mxu0 %v103
    %117 = vmatpush.msra.mxu0 %v102
    %118 = vmatpush.msra.mxu0 %v101
    %119 = vmatpush.msra.mxu0 %v100
    %120 = vmatpush.msra.mxu0 %v99
    %121 = vmatpush.msra.mxu0 %v98
    %122 = vmatpush.msra.mxu0 %v97
    %123 = vmatpush.msra.mxu0 %v96
    %124 = vmatpush.msra.mxu0 %v95
    %125 = vmatpush.msra.mxu0 %v94
    %126 = vmatpush.msra.mxu0 %v93
    %127 = vmatpush.msra.mxu0 %v92
    %128 = vmatmul.f32.gmra.mxu0 %v90
    %v129 = vpop.f32.mrf.mxu0
    %v130 = vadd.f32 %v110, %v129
    %131 = vmatmul.f32.gmra.mxu0 %v91
    %v132 = vpop.f32.mrf.mxu0
    %v133 = vadd.f32 %v110, %v132
    %134 = vdwg.mxu0
    %v135 = vmax.f32 %v130, 0.0
    %v136 = vmax.f32 %v133, 0.0
    %v137 = vld [vmem:[#allocation7] sm:$0xff]
    %v138 = vld [vmem:[#allocation7 + $0x8] sm:$0xff]
    %v139 = vld [vmem:[#allocation7 + $0x10] sm:$0xff]
    %v140 = vld [vmem:[#allocation7 + $0x18] sm:$0xff]
    %v141 = vld [vmem:[#allocation7 + $0x20] sm:$0xff]
    %v142 = vld [vmem:[#allocation7 + $0x28] sm:$0xff]
    %v143 = vld [vmem:[#allocation7 + $0x30] sm:$0xff]
    %v144 = vld [vmem:[#allocation7 + $0x38] sm:$0xff]
    %v145 = vld [vmem:[#allocation7 + $0x40] sm:$0xff]
    %v146 = vld [vmem:[#allocation7 + $0x48] sm:$0xff]
    %v147 = vld [vmem:[#allocation7 + $0x50] sm:$0xff]
    %v148 = vld [vmem:[#allocation7 + $0x58] sm:$0xff]
    %v149 = vld [vmem:[#allocation7 + $0x60] sm:$0xff]
    %v150 = vld [vmem:[#allocation7 + $0x68] sm:$0xff]
    %v151 = vld [vmem:[#allocation7 + $0x70] sm:$0xff]
    %v152 = vld [vmem:[#allocation7 + $0x78] sm:$0xff]
    %v153 = vld [vmem:[%s5] sm:$0x1]
    %v155 = vperm.slane %v153, 0
    %157 = vmatpush.msra.mxu0 %v152
    %158 = vmatpush.msra.mxu0 %v151
    %159 = vmatpush.msra.mxu0 %v150
    %160 = vmatpush.msra.mxu0 %v149
    %161 = vmatpush.msra.mxu0 %v148
    %162 = vmatpush.msra.mxu0 %v147
    %163 = vmatpush.msra.mxu0 %v146
    %164 = vmatpush.msra.mxu0 %v145
    %165 = vmatpush.msra.mxu0 %v144
    %166 = vmatpush.msra.mxu0 %v143
    %167 = vmatpush.msra.mxu0 %v142
    %168 = vmatpush.msra.mxu0 %v141
    %169 = vmatpush.msra.mxu0 %v140
    %170 = vmatpush.msra.mxu0 %v139
    %171 = vmatpush.msra.mxu0 %v138
    %172 = vmatpush.msra.mxu0 %v137
    %173 = vmatmul.f32.gmra.mxu0 %v135
    %v174 = vpop.f32.mrf.mxu0
    %v175 = vadd.f32 %v155, %v174
    %176 = vmatmul.f32.gmra.mxu0 %v136
    %v177 = vpop.f32.mrf.mxu0
    %v178 = vadd.f32 %v155, %v177
    %179 = vdwg.mxu0
    %v180 = vmax.f32 %v175, 0.0
    %v181 = vmax.f32 %v178, 0.0
    %v182 = vld [vmem:[#allocation8] sm:$0xff]
    %v183 = vld [vmem:[#allocation8 + $0x8] sm:$0xff]
    %v184 = vld [vmem:[#allocation8 + $0x10] sm:$0xff]
    %v185 = vld [vmem:[#allocation8 + $0x18] sm:$0xff]
    %v186 = vld [vmem:[#allocation8 + $0x20] sm:$0xff]
    %v187 = vld [vmem:[#allocation8 + $0x28] sm:$0xff]
    %v188 = vld [vmem:[#allocation8 + $0x30] sm:$0xff]
    %v189 = vld [vmem:[#allocation8 + $0x38] sm:$0xff]
    %v190 = vld [vmem:[#allocation8 + $0x40] sm:$0xff]
    %v191 = vld [vmem:[#allocation8 + $0x48] sm:$0xff]
    %v192 = vld [vmem:[#allocation8 + $0x50] sm:$0xff]
    %v193 = vld [vmem:[#allocation8 + $0x58] sm:$0xff]
    %v194 = vld [vmem:[#allocation8 + $0x60] sm:$0xff]
    %v195 = vld [vmem:[#allocation8 + $0x68] sm:$0xff]
    %v196 = vld [vmem:[#allocation8 + $0x70] sm:$0xff]
    %v197 = vld [vmem:[#allocation8 + $0x78] sm:$0xff]
    %v198 = vld [vmem:[%s6] sm:$0x1]
    %v200 = vperm.slane %v198, 0
    %202 = vmatpush.msra.mxu0 %v197
    %203 = vmatpush.msra.mxu0 %v196
    %204 = vmatpush.msra.mxu0 %v195
    %205 = vmatpush.msra.mxu0 %v194
    %206 = vmatpush.msra.mxu0 %v193
    %207 = vmatpush.msra.mxu0 %v192
    %208 = vmatpush.msra.mxu0 %v191
    %209 = vmatpush.msra.mxu0 %v190
    %210 = vmatpush.msra.mxu0 %v189
    %211 = vmatpush.msra.mxu0 %v188
    %212 = vmatpush.msra.mxu0 %v187
    %213 = vmatpush.msra.mxu0 %v186
    %214 = vmatpush.msra.mxu0 %v185
    %215 = vmatpush.msra.mxu0 %v184
    %216 = vmatpush.msra.mxu0 %v183
    %217 = vmatpush.msra.mxu0 %v182
    %218 = vmatmul.f32.gmra.mxu0 %v180
    %v219 = vpop.f32.mrf.mxu0
    %v220 = vadd.f32 %v200, %v219
    %221 = vmatmul.f32.gmra.mxu0 %v181
    %v222 = vpop.f32.mrf.mxu0
    %v223 = vadd.f32 %v200, %v222
    %224 = vdwg.mxu0
    %v225 = vadd.f32 %v220, %v90
    %v226 = vadd.f32 %v223, %v91
    %227 = vst [vmem:[#allocation10] sm:$0xff] %v225
    %228 = vst [vmem:[#allocation10 + $0x8] sm:$0xff] %v226
    // Predicated region
    $region46: #{tpu_custom_call.1} parent=1 // pred_check
      _
    $region47: #{tpu_custom_call.1} parent=1 // pred_check_branch
      %230 = sbr.rel (0) target = $region49
    $region48: #{tpu_custom_call.1} parent=1 // pred_region
      %232 = vsyncadd [#allocation4], 0
      %s233 = sshll.u32 [#allocation10], 4
      %s234 = int_to_ptr.vmem [resolvable:$true] %s233
      %s235 = sshll.u32 %s7, 4
      %s236 = int_to_ptr.hbm [resolvable:$true] %s235
      %241 = dma.vmem_to_hbm [thread:$0]  %s234, 256, %s236, [#allocation4], 128, 128, 8
    $region49: #{tpu_custom_call.1} parent=1 // pred_fallthru
      _
    // Predicated region
    $region50: #{tpu_custom_call.1} parent=1 // pred_check
      _
    $region51: #{tpu_custom_call.1} parent=1 // pred_check_branch
      %243 = sbr.rel (0) target = $region53
    $region52: #{tpu_custom_call.1} parent=1 // pred_region
      %245 = dma.done [#allocation4], 256
    $region53: #{tpu_custom_call.1} parent=1 // pred_fallthru
      _
    %246 = vsyncpa [#allocation3], 1
    %247 = vsyncpa [#allocation6], 1
    %248 = vsyncpa [#allocation9], 1
    %249 = vsyncpa [#allocation4], 1

// kernel: tpu_custom_call.1
$region0: #{tpu_custom_call.1}
  #allocation0 [shape = 'u32[]', space=smem, size = 0x4, offset = 0x4, fixed_abs, tag = 'smem constant byte address 0x4 - core index']
  #allocation1 [shape = 'u32[72,128]{1,0:T(1,128)}', space=vmem, size = 0x9000, scoped, tag = 'internal scratch']
  %s0 = inlined_call_operand.hbm [shape: f32[16,128], index: 0, kind: input, shape index: {}]
  %s1 = inlined_call_operand.hbm [shape: f32[128,128], index: 1, kind: input, shape index: {}]
  %s2 = inlined_call_operand.hbm [shape: f32[128,128], index: 2, kind: input, shape index: {}]
  %s3 = inlined_call_operand.hbm [shape: f32[128,128], index: 3, kind: input, shape index: {}]
  %s4 = inlined_call_operand.vmem [shape: f32[1,128], index: 4, kind: input, shape index: {}]
  %s5 = inlined_call_operand.vmem [shape: f32[1,128], index: 5, kind: input, shape index: {}]
  %s6 = inlined_call_operand.vmem [shape: f32[1,128], index: 6, kind: input, shape index: {}]
  %s7 = inlined_call_operand.hbm [shape: f32[16,128], index: 7, kind: output, shape index: {}]
  %s8 = sld [smem:[#allocation0]]
  $region54: #{tpu_custom_call.1} parent=0
    _
  %s10 = ssub.s32 1, %s8
  %s11 = scalar_select 0, %s10, %s8
  $region1: #{tpu_custom_call.1} parent=0
    #allocation2 [shape = 'u8[8192]{0}', space=vmem, size = 0x2000, scoped, tag = 'input window, operand 0, single buffered']
    #allocation3 [shape = 's32[1]{0}', space=sflag, size = 0x4, scoped, tag = 'scoped memory for tpu_custom_call.1']
    #allocation4 [shape = 's32[1]{0}', space=sflag, size = 0x4, scoped, tag = 'scoped memory for tpu_custom_call.1']
    #allocation5 [shape = 'u8[65536]{0}', space=vmem, size = 0x10000, scoped, tag = 'input window, operand 1, single buffered']
    #allocation6 [shape = 's32[1]{0}', space=sflag, size = 0x4, scoped, tag = 'scoped memory for tpu_custom_call.1']
    #allocation7 [shape = 'u8[65536]{0}', space=vmem, size = 0x10000, scoped, tag = 'input window, operand 2, single buffered']
    #allocation8 [shape = 'u8[65536]{0}', space=vmem, size = 0x10000, scoped, tag = 'input window, operand 3, single buffered']
    #allocation9 [shape = 's32[1]{0}', space=sflag, size = 0x4, scoped, tag = 'scoped memory for tpu_custom_call.1']
    #allocation10 [shape = 'u8[8192]{0}', space=vmem, size = 0x2000, scoped, tag = 'output window, operand 0, single buffered']
    %12 = vsyncpa [#allocation3], 0
    %13 = vsyncpa [#allocation6], 0
    %14 = vsyncpa [#allocation9], 0
    %15 = vsyncpa [#allocation4], 0
    // Predicated region
    $region2: #{tpu_custom_call.1} parent=1 // pred_check
      _
    $region3: #{tpu_custom_call.1} parent=1 // pred_check_branch
      %17 = sbr.rel (0) target = $region5
    $region4: #{tpu_custom_call.1} parent=1 // pred_region
      %19 = vsyncadd [#allocation3], 0
      %s20 = sshll.u32 %s0, 4
      %s21 = int_to_ptr.hbm [resolvable:$true] %s20
      %s22 = sshll.u32 [#allocation2], 4
      %s23 = int_to_ptr.vmem [resolvable:$true] %s22
      %28 = dma.hbm_to_vmem [thread:$0]  %s21, 256, %s23, [#allocation3], 128, 128, 8
    $region5: #{tpu_custom_call.1} parent=1 // pred_fallthru
      _
    // Predicated region
    $region6: #{tpu_custom_call.1} parent=1 // pred_check
      _
    $region7: #{tpu_custom_call.1} parent=1 // pred_check_branch
      %30 = sbr.rel (0) target = $region9
    $region8: #{tpu_custom_call.1} parent=1 // pred_region
      %32 = vsyncadd [#allocation6], 0
      %s33 = sshll.u32 %s1, 4
      %s34 = int_to_ptr.hbm [resolvable:$true] %s33
      %s35 = sshll.u32 [#allocation5], 4
      %s36 = int_to_ptr.vmem [resolvable:$true] %s35
      %41 = dma.hbm_to_vmem [thread:$0]  %s34, 2048, %s36, [#allocation6], 128, 128, 8
    $region9: #{tpu_custom_call.1} parent=1 // pred_fallthru
      _
    // Predicated region
    $region10: #{tpu_custom_call.1} parent=1 // pred_check
      _
    $region11: #{tpu_custom_call.1} parent=1 // pred_check_branch
      %43 = sbr.rel (0) target = $region13
    $region12: #{tpu_custom_call.1} parent=1 // pred_region
      %45 = vsyncadd [#allocation6], 0
      %s46 = sshll.u32 %s2, 4
      %s47 = int_to_ptr.hbm [resolvable:$true] %s46
      %s48 = sshll.u32 [#allocation7], 4
      %s49 = int_to_ptr.vmem [resolvable:$true] %s48
      %54 = dma.hbm_to_vmem [thread:$0]  %s47, 2048, %s49, [#allocation6], 128, 128, 8
    $region13: #{tpu_custom_call.1} parent=1 // pred_fallthru
      _
    // Predicated region
    $region14: #{tpu_custom_call.1} parent=1 // pred_check
      _
    $region15: #{tpu_custom_call.1} parent=1 // pred_check_branch
      %56 = sbr.rel (0) target = $region17
    $region16: #{tpu_custom_call.1} parent=1 // pred_region
      %58 = vsyncadd [#allocation9], 0
      %s59 = sshll.u32 %s3, 4
      %s60 = int_to_ptr.hbm [resolvable:$true] %s59
      %s61 = sshll.u32 [#allocation8], 4
      %s62 = int_to_ptr.vmem [resolvable:$true] %s61
      %67 = dma.hbm_to_vmem [thread:$0]  %s60, 2048, %s62, [#allocation9], 128, 128, 8
    $region17: #{tpu_custom_call.1} parent=1 // pred_fallthru
      _
    // Predicated region
    $region18: #{tpu_custom_call.1} parent=1 // pred_check
      _
    $region19: #{tpu_custom_call.1} parent=1 // pred_check_branch
      %69 = sbr.rel (0) target = $region21
    $region20: #{tpu_custom_call.1} parent=1 // pred_region
      _
    $region21: #{tpu_custom_call.1} parent=1 // pred_fallthru
      _
    // Predicated region
    $region22: #{tpu_custom_call.1} parent=1 // pred_check
      _
    $region23: #{tpu_custom_call.1} parent=1 // pred_check_branch
      %71 = sbr.rel (0) target = $region25
    $region24: #{tpu_custom_call.1} parent=1 // pred_region
      _
    $region25: #{tpu_custom_call.1} parent=1 // pred_fallthru
      _
    // Predicated region
    $region26: #{tpu_custom_call.1} parent=1 // pred_check
      _
    $region27: #{tpu_custom_call.1} parent=1 // pred_check_branch
      %73 = sbr.rel (0) target = $region29
    $region28: #{tpu_custom_call.1} parent=1 // pred_region
      _
    $region29: #{tpu_custom_call.1} parent=1 // pred_fallthru
      _
    // Predicated region
    $region30: #{tpu_custom_call.1} parent=1 // pred_check
      _
    $region31: #{tpu_custom_call.1} parent=1 // pred_check_branch
      %75 = sbr.rel (0) target = $region33
    $region32: #{tpu_custom_call.1} parent=1 // pred_region
      %77 = dma.done [#allocation3], 256
    $region33: #{tpu_custom_call.1} parent=1 // pred_fallthru
      _
    // Predicated region
    $region34: #{tpu_custom_call.1} parent=1 // pred_check
      _
    $region35: #{tpu_custom_call.1} parent=1 // pred_check_branch
      %79 = sbr.rel (0) target = $region37
    $region36: #{tpu_custom_call.1} parent=1 // pred_region
      %81 = dma.done [#allocation6], 2048
    $region37: #{tpu_custom_call.1} parent=1 // pred_fallthru
      _
    // Predicated region
    $region38: #{tpu_custom_call.1} parent=1 // pred_check
      _
    $region39: #{tpu_custom_call.1} parent=1 // pred_check_branch
      %83 = sbr.rel (0) target = $region41
    $region40: #{tpu_custom_call.1} parent=1 // pred_region
      %85 = dma.done [#allocation6], 2048
    $region41: #{tpu_custom_call.1} parent=1 // pred_fallthru
      _
    // Predicated region
    $region42: #{tpu_custom_call.1} parent=1 // pred_check
      _
    $region43: #{tpu_custom_call.1} parent=1 // pred_check_branch
      %87 = sbr.rel (0) target = $region45
    $region44: #{tpu_custom_call.1} parent=1 // pred_region
      %89 = dma.done [#allocation9], 2048
    $region45: #{tpu_custom_call.1} parent=1 // pred_fallthru
      _
    %v90 = vld [vmem:[#allocation2] sm:$0xff]
    %v91 = vld [vmem:[#allocation2 + $0x8] sm:$0xff]
    %v92 = vld [vmem:[#allocation5] sm:$0xff]
    %v93 = vld [vmem:[#allocation5 + $0x8] sm:$0xff]
    %v94 = vld [vmem:[#allocation5 + $0x10] sm:$0xff]
    %v95 = vld [vmem:[#allocation5 + $0x18] sm:$0xff]
    %v96 = vld [vmem:[#allocation5 + $0x20] sm:$0xff]
    %v97 = vld [vmem:[#allocation5 + $0x28] sm:$0xff]
    %v98 = vld [vmem:[#allocation5 + $0x30] sm:$0xff]
    %v99 = vld [vmem:[#allocation5 + $0x38] sm:$0xff]
    %v100 = vld [vmem:[#allocation5 + $0x40] sm:$0xff]
    %v101 = vld [vmem:[#allocation5 + $0x48] sm:$0xff]
    %v102 = vld [vmem:[#allocation5 + $0x50] sm:$0xff]
    %v103 = vld [vmem:[#allocation5 + $0x58] sm:$0xff]
    %v104 = vld [vmem:[#allocation5 + $0x60] sm:$0xff]
    %v105 = vld [vmem:[#allocation5 + $0x68] sm:$0xff]
    %v106 = vld [vmem:[#allocation5 + $0x70] sm:$0xff]
    %v107 = vld [vmem:[#allocation5 + $0x78] sm:$0xff]
    %v108 = vld [vmem:[%s4] sm:$0x1]
    %v110 = vperm.slane %v108, 0
    %112 = vmatpush.msra.mxu0 %v107
    %113 = vmatpush.msra.mxu0 %v106
    %114 = vmatpush.msra.mxu0 %v105
    %115 = vmatpush.msra.mxu0 %v104
    %116 = vmatpush.msra.mxu0 %v103
    %117 = vmatpush.msra.mxu0 %v102
    %118 = vmatpush.msra.mxu0 %v101
    %119 = vmatpush.msra.mxu0 %v100
    %120 = vmatpush.msra.mxu0 %v99
    %121 = vmatpush.msra.mxu0 %v98
    %122 = vmatpush.msra.mxu0 %v97
    %123 = vmatpush.msra.mxu0 %v96
    %124 = vmatpush.msra.mxu0 %v95
    %125 = vmatpush.msra.mxu0 %v94
    %126 = vmatpush.msra.mxu0 %v93
    %127 = vmatpush.msra.mxu0 %v92
    %128 = vmatmul.f32.gmra.mxu0 %v90
    %v129 = vpop.f32.mrf.mxu0
    %v130 = vadd.f32 %v110, %v129
    %131 = vmatmul.f32.gmra.mxu0 %v91
    %v132 = vpop.f32.mrf.mxu0
    %v133 = vadd.f32 %v110, %v132
    %134 = vdwg.mxu0
    %v135 = vmax.f32 %v130, 0.0
    %v136 = vmax.f32 %v133, 0.0
    %v137 = vld [vmem:[#allocation7] sm:$0xff]
    %v138 = vld [vmem:[#allocation7 + $0x8] sm:$0xff]
    %v139 = vld [vmem:[#allocation7 + $0x10] sm:$0xff]
    %v140 = vld [vmem:[#allocation7 + $0x18] sm:$0xff]
    %v141 = vld [vmem:[#allocation7 + $0x20] sm:$0xff]
    %v142 = vld [vmem:[#allocation7 + $0x28] sm:$0xff]
    %v143 = vld [vmem:[#allocation7 + $0x30] sm:$0xff]
    %v144 = vld [vmem:[#allocation7 + $0x38] sm:$0xff]
    %v145 = vld [vmem:[#allocation7 + $0x40] sm:$0xff]
    %v146 = vld [vmem:[#allocation7 + $0x48] sm:$0xff]
    %v147 = vld [vmem:[#allocation7 + $0x50] sm:$0xff]
    %v148 = vld [vmem:[#allocation7 + $0x58] sm:$0xff]
    %v149 = vld [vmem:[#allocation7 + $0x60] sm:$0xff]
    %v150 = vld [vmem:[#allocation7 + $0x68] sm:$0xff]
    %v151 = vld [vmem:[#allocation7 + $0x70] sm:$0xff]
    %v152 = vld [vmem:[#allocation7 + $0x78] sm:$0xff]
    %v153 = vld [vmem:[%s5] sm:$0x1]
    %v155 = vperm.slane %v153, 0
    %157 = vmatpush.msra.mxu0 %v152
    %158 = vmatpush.msra.mxu0 %v151
    %159 = vmatpush.msra.mxu0 %v150
    %160 = vmatpush.msra.mxu0 %v149
    %161 = vmatpush.msra.mxu0 %v148
    %162 = vmatpush.msra.mxu0 %v147
    %163 = vmatpush.msra.mxu0 %v146
    %164 = vmatpush.msra.mxu0 %v145
    %165 = vmatpush.msra.mxu0 %v144
    %166 = vmatpush.msra.mxu0 %v143
    %167 = vmatpush.msra.mxu0 %v142
    %168 = vmatpush.msra.mxu0 %v141
    %169 = vmatpush.msra.mxu0 %v140
    %170 = vmatpush.msra.mxu0 %v139
    %171 = vmatpush.msra.mxu0 %v138
    %172 = vmatpush.msra.mxu0 %v137
    %173 = vmatmul.f32.gmra.mxu0 %v135
    %v174 = vpop.f32.mrf.mxu0
    %v175 = vadd.f32 %v155, %v174
    %176 = vmatmul.f32.gmra.mxu0 %v136
    %v177 = vpop.f32.mrf.mxu0
    %v178 = vadd.f32 %v155, %v177
    %179 = vdwg.mxu0
    %v180 = vmax.f32 %v175, 0.0
    %v181 = vmax.f32 %v178, 0.0
    %v182 = vld [vmem:[#allocation8] sm:$0xff]
    %v183 = vld [vmem:[#allocation8 + $0x8] sm:$0xff]
    %v184 = vld [vmem:[#allocation8 + $0x10] sm:$0xff]
    %v185 = vld [vmem:[#allocation8 + $0x18] sm:$0xff]
    %v186 = vld [vmem:[#allocation8 + $0x20] sm:$0xff]
    %v187 = vld [vmem:[#allocation8 + $0x28] sm:$0xff]
    %v188 = vld [vmem:[#allocation8 + $0x30] sm:$0xff]
    %v189 = vld [vmem:[#allocation8 + $0x38] sm:$0xff]
    %v190 = vld [vmem:[#allocation8 + $0x40] sm:$0xff]
    %v191 = vld [vmem:[#allocation8 + $0x48] sm:$0xff]
    %v192 = vld [vmem:[#allocation8 + $0x50] sm:$0xff]
    %v193 = vld [vmem:[#allocation8 + $0x58] sm:$0xff]
    %v194 = vld [vmem:[#allocation8 + $0x60] sm:$0xff]
    %v195 = vld [vmem:[#allocation8 + $0x68] sm:$0xff]
    %v196 = vld [vmem:[#allocation8 + $0x70] sm:$0xff]
    %v197 = vld [vmem:[#allocation8 + $0x78] sm:$0xff]
    %v198 = vld [vmem:[%s6] sm:$0x1]
    %v200 = vperm.slane %v198, 0
    %202 = vmatpush.msra.mxu0 %v197
    %203 = vmatpush.msra.mxu0 %v196
    %204 = vmatpush.msra.mxu0 %v195
    %205 = vmatpush.msra.mxu0 %v194
    %206 = vmatpush.msra.mxu0 %v193
    %207 = vmatpush.msra.mxu0 %v192
    %208 = vmatpush.msra.mxu0 %v191
    %209 = vmatpush.msra.mxu0 %v190
    %210 = vmatpush.msra.mxu0 %v189
    %211 = vmatpush.msra.mxu0 %v188
    %212 = vmatpush.msra.mxu0 %v187
    %213 = vmatpush.msra.mxu0 %v186
    %214 = vmatpush.msra.mxu0 %v185
    %215 = vmatpush.msra.mxu0 %v184
    %216 = vmatpush.msra.mxu0 %v183
    %217 = vmatpush.msra.mxu0 %v182
    %218 = vmatmul.f32.gmra.mxu0 %v180
    %v219 = vpop.f32.mrf.mxu0
    %v220 = vadd.f32 %v200, %v219
    %221 = vmatmul.f32.gmra.mxu0 %v181
    %v222 = vpop.f32.mrf.mxu0
    %v223 = vadd.f32 %v200, %v222
    %224 = vdwg.mxu0
    %v225 = vadd.f32 %v220, %v90
    %v226 = vadd.f32 %v223, %v91
    %227 = vst [vmem:[#allocation10] sm:$0xff] %v225
    %228 = vst [vmem:[#allocation10 + $0x8] sm:$0xff] %v226
    // Predicated region
    $region46: #{tpu_custom_call.1} parent=1 // pred_check
      _
    $region47: #{tpu_custom_call.1} parent=1 // pred_check_branch
      %230 = sbr.rel (0) target = $region49
    $region48: #{tpu_custom_call.1} parent=1 // pred_region
      %232 = vsyncadd [#allocation4], 0
      %s233 = sshll.u32 [#allocation10], 4
      %s234 = int_to_ptr.vmem [resolvable:$true] %s233
      %s235 = sshll.u32 %s7, 4
      %s236 = int_to_ptr.hbm [resolvable:$true] %s235
      %241 = dma.vmem_to_hbm [thread:$0]  %s234, 256, %s236, [#allocation4], 128, 128, 8
    $region49: #{tpu_custom_call.1} parent=1 // pred_fallthru
      _
    // Predicated region
    $region50: #{tpu_custom_call.1} parent=1 // pred_check
      _
    $region51: #{tpu_custom_call.1} parent=1 // pred_check_branch
      %243 = sbr.rel (0) target = $region53
    $region52: #{tpu_custom_call.1} parent=1 // pred_region
      %245 = dma.done [#allocation4], 256
    $region53: #{tpu_custom_call.1} parent=1 // pred_fallthru
      _
    %246 = vsyncpa [#allocation3], 1
    %247 = vsyncpa [#allocation6], 1
    %248 = vsyncpa [#allocation9], 1
    %249 = vsyncpa [#allocation4], 1

</llo_original>
